<compile_context>
chip_gen: v5e
topology: v5e:2x2
jax: 0.10.0
libtpu: 0.0.40
codegen_flags: <defaults>
</compile_context>

<pallas_src>
import functools

import jax
import jax.numpy as jnp
from jax.experimental import pallas as pl
from jax.experimental.pallas import tpu as pltpu


def _label_smoothing_kernel(pred_ref, tgt_ref, out_ref, *,
                            smoothing, n_classes, n_rows, tile_rows):
    i = pl.program_id(0)

    x = pred_ref[...].astype(jnp.float32)                    # (TB, C)

    # Numerically stable log-sum-exp along the class (lane) axis.
    m = jnp.max(x, axis=-1, keepdims=True)                   # (TB, 1)
    z = x - m                                                 # (TB, C)
    lse = jnp.log(jnp.sum(jnp.exp(z), axis=-1, keepdims=True))  # (TB, 1)

    # Gather z at the target column via a lane-iota compare (scatter_ equivalent).
    tgt = tgt_ref[...]                                        # (TB, 1) int32
    col = jax.lax.broadcasted_iota(jnp.int32, z.shape, 1)
    z_tgt = jnp.sum(jnp.where(col == tgt, z, 0.0), axis=-1, keepdims=True)  # (TB, 1)
    z_sum = jnp.sum(z, axis=-1, keepdims=True)                # (TB, 1)

    # row_loss = sum_c -true_dist_c * (z_c - lse)
    #          = -( off*(sum(z) - C*lse) + (conf - off)*(z_tgt - lse) )
    confidence = 1.0 - smoothing
    off = smoothing / (n_classes - 1)
    row_loss = -(off * (z_sum - n_classes * lse)
                 + (confidence - off) * (z_tgt - lse))        # (TB, 1)

    # Mask rows that are batch padding so they don't contribute to the mean.
    row_idx = i * tile_rows + jax.lax.broadcasted_iota(jnp.int32, row_loss.shape, 0)
    out_ref[...] = jnp.where(row_idx < n_rows, row_loss, 0.0)


def label_smoothing_loss(pred, target, *, classes, smoothing=0.0, tile_rows=None):
    """pred: (N, C) float (any float dtype); target: (N,) integer class indices."""
    n, c = pred.shape
    assert c == classes

    itemsize = jnp.dtype(pred.dtype).itemsize
    # Min sublane granularity depends on dtype packing (f32: 8, bf16: 16, 8-bit: 32).
    row_align = {4: 8, 2: 16, 1: 32}.get(itemsize, 8)

    if tile_rows is None:
        # Budget ~32 MiB for the double-buffered pred tile plus f32 temporaries.
        budget = 32 * 1024 * 1024
        per_row_bytes = c * (2 * itemsize + 4 * 4) + 16
        tile_rows = min(1024, max(row_align, budget // per_row_bytes))
    # Align to the sublane granule and don't exceed the (rounded-up) batch.
    tile_rows = max(row_align, (tile_rows // row_align) * row_align)
    tile_rows = min(tile_rows, ((n + row_align - 1) // row_align) * row_align)

    n_tiles = -(-n // tile_rows)
    n_padded = n_tiles * tile_rows

    if n_padded != n:
        pred = jnp.pad(pred, ((0, n_padded - n), (0, 0)))
        target = jnp.pad(target, (0, n_padded - n))
    target2d = target.astype(jnp.int32).reshape(n_padded, 1)

    # Scoped-VMEM budget: double-buffered pred/target/output tiles + f32 temps,
    # clamped to 64 MiB so it also fits v7x's physical VMEM.
    needed = (2 * tile_rows * c * itemsize      # pred double buffer
              + 2 * tile_rows * 4               # target double buffer
              + 2 * tile_rows * 4               # per-row-loss output double buffer
              + 4 * tile_rows * c * 4)          # in-kernel f32 temporaries headroom
    vmem_limit = int(min(max(needed + (2 << 20), 32 << 20), 64 << 20))

    kernel = functools.partial(
        _label_smoothing_kernel,
        smoothing=float(smoothing),
        n_classes=int(classes),
        n_rows=int(n),
        tile_rows=int(tile_rows),
    )

    per_row = pl.pallas_call(
        kernel,
        out_shape=jax.ShapeDtypeStruct((n_padded, 1), jnp.float32),
        grid_spec=pltpu.PrefetchScalarGridSpec(
            num_scalar_prefetch=0,
            grid=(n_tiles,),
            in_specs=[
                pl.BlockSpec((tile_rows, c), lambda i: (i, 0)),
                pl.BlockSpec((tile_rows, 1), lambda i: (i, 0)),
            ],
            out_specs=pl.BlockSpec((tile_rows, 1), lambda i: (i, 0)),
        ),
        compiler_params=pltpu.CompilerParams(
            dimension_semantics=("parallel",),
            vmem_limit_bytes=vmem_limit,
        ),
    )(pred, target2d)

    return jnp.sum(per_row) / n


def _reference(pred, target, classes, smoothing):
    logp = jax.nn.log_softmax(pred.astype(jnp.float32), axis=-1)
    confidence = 1.0 - smoothing
    off = smoothing / (classes - 1)
    one_hot = jax.nn.one_hot(target, classes, dtype=jnp.float32)
    true_dist = one_hot * confidence + (1.0 - one_hot) * off
    return jnp.mean(jnp.sum(-true_dist * logp, axis=-1))


if __name__ == "__main__":
    key = jax.random.PRNGKey(0)

    # Test 1: small deterministic example (batch=16, classes=20, smoothing=0.1).
    N, C, smoothing = 16, 20, 0.1
    kp, kt, key = jax.random.split(key, 3)
    pred = jax.random.normal(kp, (N, C), dtype=jnp.float32)
    target = jax.random.randint(kt, (N,), 0, C, dtype=jnp.int32)
    loss = jax.block_until_ready(
        label_smoothing_loss(pred, target, classes=C, smoothing=smoothing))
    ref = _reference(pred, target, C, smoothing)
    assert jnp.allclose(loss, ref, atol=1e-5, rtol=1e-5), (loss, ref)

    # Test 2: non-multiple batch with an explicit tile -> multi-tile parallel grid
    # plus row padding/masking (N=200 pads to 256 with tile_rows=64).
    N2, C2, smoothing2 = 200, 130, 0.2
    kp2, kt2, key = jax.random.split(key, 3)
    pred2 = jax.random.normal(kp2, (N2, C2), dtype=jnp.float32)
    target2 = jax.random.randint(kt2, (N2,), 0, C2, dtype=jnp.int32)
    loss2 = jax.block_until_ready(
        label_smoothing_loss(pred2, target2, classes=C2, smoothing=smoothing2,
                             tile_rows=64))
    ref2 = _reference(pred2, target2, C2, smoothing2)
    assert jnp.allclose(loss2, ref2, atol=1e-5, rtol=1e-5), (loss2, ref2)

    print("KERNEL_OK")
</pallas_src>

<mosaic_0001>
module attributes {stable_mosaic.version = 11 : i64} {
  func.func @_label_smoothing_kernel(%arg0: i32, %arg1: memref<16x20xf32, #tpu.memory_space<vmem>>, %arg2: memref<16x1xi32, #tpu.memory_space<vmem>>, %arg3: memref<16x1xf32, #tpu.memory_space<vmem>>) attributes {dimension_semantics = [#tpu.dimension_semantics<parallel>], iteration_bounds = array<i64: 1>, scalar_prefetch = 0 : i64, scratch_operands = 0 : i64, tpu.core_type = #tpu.core_type<tc>, window_params = [{transform_indices = @transform_0, window_bounds = array<i64: 16, 20>}, {transform_indices = @transform_1, window_bounds = array<i64: 16, 1>}, {transform_indices = @transform_2, window_bounds = array<i64: 16, 1>}]} {
    %c0 = arith.constant 0 : index
    %c0_0 = arith.constant 0 : index
    %0 = vector.load %arg1[%c0, %c0_0] : memref<16x20xf32, #tpu.memory_space<vmem>>, vector<16x20xf32>
    %cst = arith.constant dense<0xFF800000> : vector<16xf32>
    %1 = vector.multi_reduction <maximumf>, %0, %cst [1] : vector<16x20xf32> to vector<16xf32>
    %2 = vector.shape_cast %1 : vector<16xf32> to vector<16x1xf32>
    %3 = vector.broadcast %2 : vector<16x1xf32> to vector<16x20xf32>
    %4 = arith.subf %0, %3 : vector<16x20xf32>
    %5 = math.exp %4 : vector<16x20xf32>
    %cst_1 = arith.constant dense<0.000000e+00> : vector<16xf32>
    %6 = vector.multi_reduction <add>, %5, %cst_1 [1] : vector<16x20xf32> to vector<16xf32>
    %7 = vector.shape_cast %6 : vector<16xf32> to vector<16x1xf32>
    %8 = math.log %7 : vector<16x1xf32>
    %c0_2 = arith.constant 0 : index
    %c0_3 = arith.constant 0 : index
    %9 = vector.load %arg2[%c0_2, %c0_3] : memref<16x1xi32, #tpu.memory_space<vmem>>, vector<16x1xi32>
    %10 = tpu.iota {dimensions = array<i32: 1>} : vector<16x20xi32>
    %11 = vector.broadcast %9 : vector<16x1xi32> to vector<16x20xi32>
    %12 = arith.cmpi eq, %10, %11 : vector<16x20xi32>
    %cst_4 = arith.constant 0.000000e+00 : f32
    %13 = vector.broadcast %cst_4 : f32 to vector<16x20xf32>
    %14 = arith.select %12, %4, %13 : vector<16x20xi1>, vector<16x20xf32>
    %cst_5 = arith.constant dense<0.000000e+00> : vector<16xf32>
    %15 = vector.multi_reduction <add>, %14, %cst_5 [1] : vector<16x20xf32> to vector<16xf32>
    %16 = vector.shape_cast %15 : vector<16xf32> to vector<16x1xf32>
    %cst_6 = arith.constant dense<0.000000e+00> : vector<16xf32>
    %17 = vector.multi_reduction <add>, %4, %cst_6 [1] : vector<16x20xf32> to vector<16xf32>
    %18 = vector.shape_cast %17 : vector<16xf32> to vector<16x1xf32>
    %cst_7 = arith.constant 2.000000e+01 : f32
    %19 = vector.broadcast %cst_7 : f32 to vector<16x1xf32>
    %20 = arith.mulf %19, %8 : vector<16x1xf32>
    %21 = arith.subf %18, %20 : vector<16x1xf32>
    %cst_8 = arith.constant 0.00526315812 : f32
    %22 = vector.broadcast %cst_8 : f32 to vector<16x1xf32>
    %23 = arith.mulf %22, %21 : vector<16x1xf32>
    %24 = arith.subf %16, %8 : vector<16x1xf32>
    %cst_9 = arith.constant 0.894736826 : f32
    %25 = vector.broadcast %cst_9 : f32 to vector<16x1xf32>
    %26 = arith.mulf %25, %24 : vector<16x1xf32>
    %27 = arith.addf %23, %26 : vector<16x1xf32>
    %cst_10 = arith.constant 0.000000e+00 : f32
    %28 = vector.broadcast %cst_10 : f32 to vector<16x1xf32>
    %29 = arith.subf %28, %27 : vector<16x1xf32>
    %c16_i32 = arith.constant 16 : i32
    %30 = arith.muli %arg0, %c16_i32 : i32
    %31 = tpu.iota {dimensions = array<i32: 0>} : vector<16x1xi32>
    %32 = vector.broadcast %30 : i32 to vector<16x1xi32>
    %33 = arith.addi %32, %31 : vector<16x1xi32>
    %c16_i32_11 = arith.constant 16 : i32
    %34 = vector.broadcast %c16_i32_11 : i32 to vector<16x1xi32>
    %35 = arith.cmpi slt, %33, %34 : vector<16x1xi32>
    %cst_12 = arith.constant 0.000000e+00 : f32
    %36 = vector.broadcast %cst_12 : f32 to vector<16x1xf32>
    %37 = arith.select %35, %29, %36 : vector<16x1xi1>, vector<16x1xf32>
    %c0_13 = arith.constant 0 : index
    %c0_14 = arith.constant 0 : index
    %38 = vector.load %arg3[%c0_13, %c0_14] : memref<16x1xf32, #tpu.memory_space<vmem>>, vector<16x1xf32>
    tpu.vector_store %arg3[%c0_13, %c0_14], %37 {strides = array<i32>} : memref<16x1xf32, #tpu.memory_space<vmem>>, vector<16x1xf32>,
    return
  }
  func.func @transform_0(%arg0: i32) -> (i32, i32) {
    %c0_i32 = arith.constant 0 : i32
    %c0_i32_0 = arith.constant 0 : i32
    return %arg0, %c0_i32 : i32, i32
  }
  func.func @transform_1(%arg0: i32) -> (i32, i32) {
    %c0_i32 = arith.constant 0 : i32
    %c0_i32_0 = arith.constant 0 : i32
    return %arg0, %c0_i32 : i32, i32
  }
  func.func @transform_2(%arg0: i32) -> (i32, i32) {
    %c0_i32 = arith.constant 0 : i32
    %c0_i32_0 = arith.constant 0 : i32
    return %arg0, %c0_i32 : i32, i32
  }
}

</mosaic_0001>

<llo_original>
// kernel: tpu_custom_call.1
$region0: #{tpu_custom_call.1}
  #allocation0 [shape = 'u32[]', space=smem, size = 0x4, offset = 0x4, fixed_abs, tag = 'smem constant byte address 0x4 - core index']
  #allocation1 [shape = 'u32[72,128]{1,0:T(1,128)}', space=vmem, size = 0x9000, scoped, tag = 'internal scratch']
  %s0 = inlined_call_operand.vmem [shape: f32[16,20], index: 0, kind: input, shape index: {}]
  %s1 = inlined_call_operand.vmem [shape: s32[16,1], index: 1, kind: input, shape index: {}]
  %s2 = inlined_call_operand.vmem [shape: f32[16,1], index: 2, kind: output, shape index: {}]
  %s3 = sld [smem:[#allocation0]]
  $region18: #{tpu_custom_call.1} parent=0
    _
  %s5 = ssub.s32 1, %s3
  %s6 = scalar_select 0, %s5, %s3
  // Predicated region
  $region2: #{tpu_custom_call.1} parent=0 // pred_check
    _
  $region3: #{tpu_custom_call.1} parent=0 // pred_check_branch
    %8 = sbr.rel (0) target = $region5
  $region4: #{tpu_custom_call.1} parent=0 // pred_region
    _
  $region5: #{tpu_custom_call.1} parent=0 // pred_fallthru
    _
  // Predicated region
  $region6: #{tpu_custom_call.1} parent=0 // pred_check
    _
  $region7: #{tpu_custom_call.1} parent=0 // pred_check_branch
    %10 = sbr.rel (0) target = $region9
  $region8: #{tpu_custom_call.1} parent=0 // pred_region
    _
  $region9: #{tpu_custom_call.1} parent=0 // pred_fallthru
    _
  %v11 = vld [vmem:[%s0] sm:$0xff]
  %v12 = vld [vmem:[%s0 + $0x8] sm:$0xff]
  %vm13 = vcmask 162816
  %v14 = vsel %vm13, %v11, -inf
  %15 = vmax.xlane.f32.xlu0 %v14
  %v16 = vpop.xlane.xlu0 %15
  %v17 = vsel %vm13, %v12, -inf
  %18 = vmax.xlane.f32.xlu0 %v17
  %v19 = vpop.xlane.xlu0 %18
  %v20 = vsub.f32 %v11, %v16
  %v21 = vsub.f32 %v12, %v19
  %v22 = vmul.f32 %v20, 1.442695
  %v23 = vpow.pop %v22
  %v24 = vmul.f32 %v21, 1.442695
  %v25 = vpow.pop %v24
  %v26 = vsel %vm13, %v23, 0.0
  %27 = vadd.xlane.f32.xlu0 %v26
  %v28 = vpop.xlane.xlu0 %27
  %v29 = vsel %vm13, %v25, 0.0
  %30 = vadd.xlane.f32.xlu0 %v29
  %v31 = vpop.xlane.xlu0 %30
  %v32 = vlog2.pop %v28
  %v33 = vmul.f32 %v32, 0.6931472
  %v34 = vlog2.pop %v31
  %v35 = vmul.f32 %v34, 0.6931472
  %v36 = vld [vmem:[%s1] sm:$0xff]
  %v37 = vld [vmem:[%s1 + $0x8] sm:$0xff]
  %v38 = vlaneseq
  %v39 = vand.u32 %v38, 127
  %40 = vset.pattern.permute.xlu0 0
  %41 = vperm.xlu0 %40, %v36
  %v42 = vpop.permute.xlu0 %41
  %43 = vset.pattern.permute.xlu0 0
  %44 = vperm.xlu0 %43, %v37
  %v45 = vpop.permute.xlu0 %44
  %vm46 = vcmp.eq.s32.totalorder %v39, %v42
  %vm47 = vcmp.eq.s32.totalorder %v39, %v45
  %v48 = vsel %vm46, %v20, 0.0
  %v49 = vsel %vm47, %v21, 0.0
  %v50 = vsel %vm13, %v48, 0.0
  %51 = vadd.xlane.f32.xlu0 %v50
  %v52 = vpop.xlane.xlu0 %51
  %v53 = vsel %vm13, %v49, 0.0
  %54 = vadd.xlane.f32.xlu0 %v53
  %v55 = vpop.xlane.xlu0 %54
  %v56 = vsel %vm13, %v20, 0.0
  %57 = vadd.xlane.f32.xlu0 %v56
  %v58 = vpop.xlane.xlu0 %57
  %v59 = vsel %vm13, %v21, 0.0
  %60 = vadd.xlane.f32.xlu0 %v59
  %v61 = vpop.xlane.xlu0 %60
  %v62 = vmul.f32 %v33, 20.0
  %v63 = vmul.f32 %v35, 20.0
  %v64 = vsub.f32 %v58, %v62
  %v65 = vsub.f32 %v61, %v63
  %v66 = vmul.f32 %v64, 0.005263158
  %v67 = vmul.f32 %v65, 0.005263158
  %v68 = vsub.f32 %v52, %v33
  %v69 = vsub.f32 %v55, %v35
  %v70 = vmul.f32 %v68, 0.8947368
  %v71 = vmul.f32 %v69, 0.8947368
  %v72 = vadd.f32 %v66, %v70
  %v73 = vadd.f32 %v67, %v71
  %v74 = vsub.f32 0.0, %v72
  %v75 = vsub.f32 0.0, %v73
  %s76 = smul.u32 0, 16
  %v77 = vlaneseq
  %v78 = vshrl.u32 %v77, 7
  %v79 = vadd.s32 %v78, 8
  %v80 = vstv %s76
  %v81 = vadd.s32 %v80, %v78
  %v82 = vadd.s32 %v80, %v79
  %vm83 = vcmp.lt.s32.totalorder %v81, 16
  %vm84 = vcmp.lt.s32.totalorder %v82, 16
  %v85 = vsel %vm83, %v74, 0.0
  %v86 = vsel %vm84, %v75, 0.0
  %vm87 = vcmask 7168
  %88 = vst.msk [vmem:[%s2] sm:$0xff] %vm87, %v85
  %89 = vst.msk [vmem:[%s2 + $0x8] sm:$0xff] %vm87, %v86
  // Predicated region
  $region10: #{tpu_custom_call.1} parent=0 // pred_check
    _
  $region11: #{tpu_custom_call.1} parent=0 // pred_check_branch
    %91 = sbr.rel (0) target = $region13
  $region12: #{tpu_custom_call.1} parent=0 // pred_region
    _
  $region13: #{tpu_custom_call.1} parent=0 // pred_fallthru
    _
  // Predicated region
  $region14: #{tpu_custom_call.1} parent=0 // pred_check
    _
  $region15: #{tpu_custom_call.1} parent=0 // pred_check_branch
    %93 = sbr.rel (0) target = $region17
  $region16: #{tpu_custom_call.1} parent=0 // pred_region
    _
  $region17: #{tpu_custom_call.1} parent=0 // pred_fallthru
    _

</llo_original>
